<compile_context>
chip_gen: v7x
topology: tpu7x:2x2x1
jax: 0.10.0
libtpu: 0.0.40
codegen_flags: <defaults>
</compile_context>

<pallas_src>
import jax
import jax.numpy as jnp
from jax.experimental import pallas as pl
from jax.experimental.pallas import tpu as pltpu


def feataug_kernel(feats_ref, aug_ref, mask_ref, inter_ref, inner_ref):
    f = feats_ref[...]                      # (R, Dp) f32 tile
    r = f.shape[0]

    # Packed int8 mask (values 0..7, so int8 sign extension is a non-issue):
    #   bit0    : inner selector (0 keep feats, 1 take aug row)
    #   bits1-2 : inter code     (0 own, 1 prev row, 2 next row, 3 zero row)
    m = mask_ref[...].astype(jnp.int32)
    inner_sel = m & 1
    inter_code = m >> 1

    # ---- inner exchange -----------------------------------------------------
    inner = jnp.where(inner_sel == 0, f, aug_ref[...])

    # ---- inter exchange: partner rows rebuilt in-kernel via XLU rolls -------
    # Row parity is baked into the mask by the wrapper, so no iota / parity
    # compare / extra select is needed here.  Pairs (2j, 2j+1) never straddle
    # a tile boundary (row_tile is even), so the wrap rows of the rolls are
    # never selected.
    down = pltpu.roll(f, shift=1, axis=0)        # down[i] = f[i-1]
    up = pltpu.roll(f, shift=r - 1, axis=0)      # up[i]   = f[i+1]
    cand = jnp.where(inter_code == 1, down, up)
    inter = jnp.where(inter_code == 0, f,
                      jnp.where(inter_code == 3, 0.0, cand))

    def l2_normalize(x):
        # F.normalize: x / max(||x||, 1e-12) == x * rsqrt(max(||x||^2, 1e-24))
        ssq = jnp.sum(x * x, axis=-1, keepdims=True)
        return x * jax.lax.rsqrt(jnp.maximum(ssq, 1e-24))

    inter_ref[...] = l2_normalize(inter).astype(inter_ref.dtype)
    inner_ref[...] = l2_normalize(inner).astype(inner_ref.dtype)


def _pick_row_tile(n_rows, d_pad, vmem_data_budget):
    """Largest row tile that (a) divides N, (b) satisfies Mosaic sublane
    tiling for partial blocks (multiple of 32 rows, or the full batch),
    (c) fits the pipelined VMEM data budget, and (d) keeps the grid at >= 2
    parallel steps when the batch allows it (v7x has 2 TensorCores)."""
    # per-row bytes: 2 f32 inputs x3 buffers + 1 int8 input x2 + 2 f32 outputs x2
    bytes_per_row = 42 * d_pad
    cap_rows = max(vmem_data_budget // bytes_per_row, 8)

    candidates = [t for t in range(32, n_rows, 32) if n_rows % t == 0]
    if n_rows % 2 == 0:
        candidates.append(n_rows)

    for need_two_steps in (True, False):
        fitting = [t for t in candidates
                   if t <= cap_rows and (not need_two_steps or n_rows // t >= 2)]
        if fitting:
            return max(fitting)
    return min(candidates)   # tiny-VMEM fallback: smallest legal tile


def feat_aug(feats, aug_feats, targets, *, probability, key,
             row_tile=None, out_dtype=None):
    """feats: (N, D) f32; aug_feats: (4, N, D) f32; targets: (N,) int32."""
    N, D = feats.shape
    assert N % 2 == 0, "FeatAug pairs rows (2j, 2j+1); N must be even"
    # TODO(synk): emit bf16 outputs here (-24% HBM write traffic) if downstream
    # tolerates it; kept f32 to match F.normalize's dtype semantics.
    out_dtype = feats.dtype if out_dtype is None else out_dtype

    k_branch, k_inner, k_inter = jax.random.split(key, 3)

    # --- glue: randomness / mask packing (mirrors python `random` usage) ----
    branch = jax.random.randint(k_branch, (), 0, 4)
    aug_feat = jax.lax.dynamic_index_in_dim(aug_feats, branch, axis=0,
                                            keepdims=False)

    n_zero = int(probability * D)

    def make_mask_bits(k, rows):
        # Exactly int(p*D) zeros per row, uniformly placed (== random.shuffle
        # of [0]*n_zero + [1]*(D-n_zero)).  One batched double-argsort instead
        # of N vmapped permutations (old glue dominated wall-clock).
        u = jax.random.uniform(k, (rows, D))
        ranks = jnp.argsort(jnp.argsort(u, axis=-1), axis=-1)
        return (ranks >= n_zero).astype(jnp.int32)

    inner_bits = make_mask_bits(k_inner, N)           # (N, D)
    pair_bits = make_mask_bits(k_inter, N // 2)       # (N/2, D)

    t_pairs = targets.reshape(N // 2, 2)
    same = t_pairs[:, 0] == t_pairs[:, 1]             # (N/2,)

    # Packed int8 mask with parity baked in:
    #   bit0    : inner selector
    #   bits1-2 : inter code  0=own  1=prev row (odd rows)  2=next row (even)  3=zero
    row_parity = (jnp.arange(N, dtype=jnp.int32) & 1)[:, None]     # (N, 1)
    take_code = jnp.where(row_parity == 0, 2, 1)                   # partner direction
    pair_bits_full = jnp.repeat(pair_bits, 2, axis=0)              # (N, D)
    same_full = jnp.repeat(same, 2)[:, None]                       # (N, 1)
    inter_code = jnp.where(same_full,
                           jnp.where(pair_bits_full == 0, 0, take_code), 3)
    mask_packed = (inner_bits | (inter_code << 1)).astype(jnp.int8)  # values 0..7

    # --- lane padding: keep output blocks lane-dense (multiple of 128) ------
    D_pad = ((D + 127) // 128) * 128
    if D_pad != D:
        pad = ((0, 0), (0, D_pad - D))
        feats_k = jnp.pad(feats, pad)
        aug_k = jnp.pad(aug_feat, pad)
        mask_k = jnp.pad(mask_packed, pad)   # code 0 -> keep own (=0); norm unaffected
    else:
        feats_k, aug_k, mask_k = feats, aug_feat, mask_packed

    # --- VMEM sizing (per-generation aware) ---------------------------------
    try:
        vmem_cap = pltpu.get_tpu_info().vmem_capacity_bytes  # 128 MiB v5e/v6e, 64 MiB v7x
    except Exception:
        vmem_cap = 64 << 20                                  # conservative (v7x per-TC)
    vmem_limit = max(32 << 20, min(int(0.75 * vmem_cap), 96 << 20))
    data_budget = min(vmem_limit // 2, 48 << 20)    # ~24 MiB v7x, ~48 MiB v5e/v6e

    if row_tile is None:
        row_tile = _pick_row_tile(N, D_pad, data_budget)
    row_tile = min(row_tile, N)
    assert N % row_tile == 0 and row_tile % 2 == 0
    assert row_tile == N or row_tile % 32 == 0   # int8 mask partial-block tiling

    grid = (N // row_tile,)
    row_map = lambda i: (i, 0)

    cost = pl.CostEstimate(
        flops=10 * N * D_pad,                      # selects + square/accumulate (VPU)
        transcendentals=2 * N,                     # one rsqrt per output row
        bytes_accessed=17 * N * D_pad)             # 2x f32 in + i8 in + 2x f32 out

    def _build_and_run(deep_input_buffers):
        pm = ({"pipeline_mode": pl.Buffered(3)} if deep_input_buffers else {})
        f32_in_spec = pl.BlockSpec((row_tile, D_pad), row_map, **pm)
        plain_spec = pl.BlockSpec((row_tile, D_pad), row_map)
        return pl.pallas_call(
            feataug_kernel,
            out_shape=(jax.ShapeDtypeStruct((N, D_pad), out_dtype),
                       jax.ShapeDtypeStruct((N, D_pad), out_dtype)),
            grid=grid,
            in_specs=[f32_in_spec, f32_in_spec, plain_spec],
            out_specs=(plain_spec, plain_spec),
            compiler_params=pltpu.CompilerParams(
                dimension_semantics=("parallel",),
                vmem_limit_bytes=vmem_limit),
            cost_estimate=cost,
        )(feats_k, aug_k, mask_k)

    try:
        inter_n, inner_n = _build_and_run(True)
    except Exception:
        # Fallback if 3-deep input buffering is rejected on this jax build.
        inter_n, inner_n = _build_and_run(False)

    if D_pad != D:
        inter_n = inter_n[:, :D]
        inner_n = inner_n[:, :D]

    return inter_n, inner_n, (aug_feat, inner_bits, pair_bits, same)


def _reference(feats, aug_feat, inner_bits, pair_bits, same):
    """Pure-JAX reference mirroring the torch module directly."""
    N, D = feats.shape
    inner = jnp.where(inner_bits == 0, feats, aug_feat)

    f_even = feats[0::2]                       # (N/2, D)
    f_odd = feats[1::2]                        # (N/2, D)
    t1 = jnp.where(pair_bits == 0, f_even, f_odd)
    t2 = jnp.where(pair_bits == 1, f_even, f_odd)
    inter = jnp.where(same[:, None, None],
                      jnp.stack([t1, t2], axis=1), 0.0).reshape(N, D)

    def l2n(x):
        nrm = jnp.sqrt(jnp.sum(x * x, axis=-1, keepdims=True))
        return x / jnp.maximum(nrm, 1e-12)

    return l2n(inter), l2n(inner)


if __name__ == "__main__":
    N, D = 128, 256            # small, lane-aligned demo; auto tile -> grid of 2
    probability = 0.3

    key = jax.random.PRNGKey(0)
    k_f, k_a, k_run = jax.random.split(key, 3)

    feats = jax.random.normal(k_f, (N, D), dtype=jnp.float32)
    aug_feats = jax.random.normal(k_a, (4, N, D), dtype=jnp.float32)

    # half of the (2j, 2j+1) pairs share a target -> inter rows populated there
    pair_ids = jnp.arange(N // 2, dtype=jnp.int32)
    match = (pair_ids % 2) == 0
    t_even = pair_ids
    t_odd = jnp.where(match, pair_ids, pair_ids + 10_000)
    targets = jnp.stack([t_even, t_odd], axis=1).reshape(N).astype(jnp.int32)

    inter_n, inner_n, (aug_feat, inner_bits, pair_bits, same) = feat_aug(
        feats, aug_feats, targets, probability=probability, key=k_run)
    jax.block_until_ready((inter_n, inner_n))

    ref_inter, ref_inner = _reference(feats, aug_feat, inner_bits, pair_bits, same)
    assert jnp.allclose(inter_n, ref_inter, atol=1e-5, rtol=1e-5)
    assert jnp.allclose(inner_n, ref_inner, atol=1e-5, rtol=1e-5)

    print("KERNEL_OK")
</pallas_src>

<mosaic_0001>
module attributes {stable_mosaic.version = 11 : i64} {
  func.func @feataug_kernel(%arg0: i32, %arg1: memref<64x256xf32, #tpu.memory_space<vmem>>, %arg2: memref<64x256xf32, #tpu.memory_space<vmem>>, %arg3: memref<64x256xi8, #tpu.memory_space<vmem>>, %arg4: memref<64x256xf32, #tpu.memory_space<vmem>>, %arg5: memref<64x256xf32, #tpu.memory_space<vmem>>) attributes {dimension_semantics = [#tpu.dimension_semantics<parallel>], iteration_bounds = array<i64: 2>, scalar_prefetch = 0 : i64, scratch_operands = 0 : i64, tpu.core_type = #tpu.core_type<tc>, window_params = [{transform_indices = @transform_0, window_bounds = array<i64: 64, 256>}, {transform_indices = @transform_1, window_bounds = array<i64: 64, 256>}, {transform_indices = @transform_2, window_bounds = array<i64: 64, 256>}, {transform_indices = @transform_3, window_bounds = array<i64: 64, 256>}, {transform_indices = @transform_4, window_bounds = array<i64: 64, 256>}]} {
    %c0 = arith.constant 0 : index
    %c0_0 = arith.constant 0 : index
    %0 = vector.load %arg1[%c0, %c0_0] : memref<64x256xf32, #tpu.memory_space<vmem>>, vector<64x256xf32>
    %c0_1 = arith.constant 0 : index
    %c0_2 = arith.constant 0 : index
    %1 = vector.load %arg3[%c0_1, %c0_2] : memref<64x256xi8, #tpu.memory_space<vmem>>, vector<64x256xi8>
    %2 = arith.extsi %1 : vector<64x256xi8> to vector<64x256xi32>
    %c1_i32 = arith.constant 1 : i32
    %3 = vector.broadcast %c1_i32 : i32 to vector<64x256xi32>
    %4 = arith.andi %2, %3 : vector<64x256xi32>
    %c1_i32_3 = arith.constant 1 : i32
    %5 = vector.broadcast %c1_i32_3 : i32 to vector<64x256xi32>
    %6 = arith.shrsi %2, %5 : vector<64x256xi32>
    %c0_i32 = arith.constant 0 : i32
    %7 = vector.broadcast %c0_i32 : i32 to vector<64x256xi32>
    %8 = arith.cmpi eq, %4, %7 : vector<64x256xi32>
    %c0_4 = arith.constant 0 : index
    %c0_5 = arith.constant 0 : index
    %9 = vector.load %arg2[%c0_4, %c0_5] : memref<64x256xf32, #tpu.memory_space<vmem>>, vector<64x256xf32>
    %10 = arith.select %8, %0, %9 : vector<64x256xi1>, vector<64x256xf32>
    %c1_i32_6 = arith.constant 1 : i32
    %11 = tpu.dynamic_rotate %0 by %c1_i32_6 dim 0 : vector<64x256xf32>, i32 -> vector<64x256xf32>
    %c63_i32 = arith.constant 63 : i32
    %12 = tpu.dynamic_rotate %0 by %c63_i32 dim 0 : vector<64x256xf32>, i32 -> vector<64x256xf32>
    %c1_i32_7 = arith.constant 1 : i32
    %13 = vector.broadcast %c1_i32_7 : i32 to vector<64x256xi32>
    %14 = arith.cmpi eq, %6, %13 : vector<64x256xi32>
    %15 = arith.select %14, %11, %12 : vector<64x256xi1>, vector<64x256xf32>
    %c0_i32_8 = arith.constant 0 : i32
    %16 = vector.broadcast %c0_i32_8 : i32 to vector<64x256xi32>
    %17 = arith.cmpi eq, %6, %16 : vector<64x256xi32>
    %c3_i32 = arith.constant 3 : i32
    %18 = vector.broadcast %c3_i32 : i32 to vector<64x256xi32>
    %19 = arith.cmpi eq, %6, %18 : vector<64x256xi32>
    %cst = arith.constant 0.000000e+00 : f32
    %20 = vector.broadcast %cst : f32 to vector<64x256xf32>
    %21 = arith.select %19, %20, %15 : vector<64x256xi1>, vector<64x256xf32>
    %22 = arith.select %17, %0, %21 : vector<64x256xi1>, vector<64x256xf32>
    %23 = arith.mulf %22, %22 : vector<64x256xf32>
    %cst_9 = arith.constant dense<0.000000e+00> : vector<64xf32>
    %24 = vector.multi_reduction <add>, %23, %cst_9 [1] : vector<64x256xf32> to vector<64xf32>
    %25 = vector.shape_cast %24 : vector<64xf32> to vector<64x1xf32>
    %cst_10 = arith.constant 1.000000e-24 : f32
    %26 = vector.broadcast %cst_10 : f32 to vector<64x1xf32>
    %27 = arith.maximumf %25, %26 : vector<64x1xf32>
    %28 = math.rsqrt %27 : vector<64x1xf32>
    %29 = vector.broadcast %28 : vector<64x1xf32> to vector<64x256xf32>
    %30 = arith.mulf %22, %29 : vector<64x256xf32>
    %c0_11 = arith.constant 0 : index
    %c0_12 = arith.constant 0 : index
    %31 = vector.load %arg4[%c0_11, %c0_12] : memref<64x256xf32, #tpu.memory_space<vmem>>, vector<64x256xf32>
    tpu.vector_store %arg4[%c0_11, %c0_12], %30 {strides = array<i32>} : memref<64x256xf32, #tpu.memory_space<vmem>>, vector<64x256xf32>,
    %32 = arith.mulf %10, %10 : vector<64x256xf32>
    %cst_13 = arith.constant dense<0.000000e+00> : vector<64xf32>
    %33 = vector.multi_reduction <add>, %32, %cst_13 [1] : vector<64x256xf32> to vector<64xf32>
    %34 = vector.shape_cast %33 : vector<64xf32> to vector<64x1xf32>
    %cst_14 = arith.constant 1.000000e-24 : f32
    %35 = vector.broadcast %cst_14 : f32 to vector<64x1xf32>
    %36 = arith.maximumf %34, %35 : vector<64x1xf32>
    %37 = math.rsqrt %36 : vector<64x1xf32>
    %38 = vector.broadcast %37 : vector<64x1xf32> to vector<64x256xf32>
    %39 = arith.mulf %10, %38 : vector<64x256xf32>
    %c0_15 = arith.constant 0 : index
    %c0_16 = arith.constant 0 : index
    %40 = vector.load %arg5[%c0_15, %c0_16] : memref<64x256xf32, #tpu.memory_space<vmem>>, vector<64x256xf32>
    tpu.vector_store %arg5[%c0_15, %c0_16], %39 {strides = array<i32>} : memref<64x256xf32, #tpu.memory_space<vmem>>, vector<64x256xf32>,
    return
  }
  func.func @transform_0(%arg0: i32) -> (i32, i32) {
    %c0_i32 = arith.constant 0 : i32
    %c0_i32_0 = arith.constant 0 : i32
    return %arg0, %c0_i32 : i32, i32
  }
  func.func @transform_1(%arg0: i32) -> (i32, i32) {
    %c0_i32 = arith.constant 0 : i32
    %c0_i32_0 = arith.constant 0 : i32
    return %arg0, %c0_i32 : i32, i32
  }
  func.func @transform_2(%arg0: i32) -> (i32, i32) {
    %c0_i32 = arith.constant 0 : i32
    %c0_i32_0 = arith.constant 0 : i32
    return %arg0, %c0_i32 : i32, i32
  }
  func.func @transform_3(%arg0: i32) -> (i32, i32) {
    %c0_i32 = arith.constant 0 : i32
    %c0_i32_0 = arith.constant 0 : i32
    return %arg0, %c0_i32 : i32, i32
  }
  func.func @transform_4(%arg0: i32) -> (i32, i32) {
    %c0_i32 = arith.constant 0 : i32
    %c0_i32_0 = arith.constant 0 : i32
    return %arg0, %c0_i32 : i32, i32
  }
}

</mosaic_0001>

<llo_original>
// kernel: tpu_custom_call.1
$region0: #{tpu_custom_call.1}
  #allocation0 [shape = 'u32[]', space=smem, size = 0x4, offset = 0x4, fixed_abs, tag = 'smem constant byte address 0x4 - core index']
  #allocation1 [shape = 'u32[144,128]{1,0:T(1,128)}', space=vmem, size = 0x12000, scoped, tag = 'internal scratch']
  %s0 = inlined_call_operand.hbm [shape: f32[128,256], index: 0, kind: input, shape index: {}]
  %s1 = inlined_call_operand.hbm [shape: f32[128,256], index: 1, kind: input, shape index: {}]
  %s2 = inlined_call_operand.hbm [shape: s8[128,256], index: 2, kind: input, shape index: {}]
  %s3 = inlined_call_operand.hbm [shape: f32[128,256], index: 3, kind: output, shape index: {0}]
  %s4 = inlined_call_operand.hbm [shape: f32[128,256], index: 4, kind: output, shape index: {1}]
  %5 = xla_tuple %s3, %s4
  %s6 = sld [smem:[#allocation0]]
  $region65: #{tpu_custom_call.1} parent=0
    _
  %s8 = ssub.s32 1, %s6
  %s9 = scalar_select 0, %s8, %s6
  $region1: #{tpu_custom_call.1} parent=0
    #allocation2 [shape = 'u8[131072]{0}', space=vmem, size = 0x20000, scoped, tag = 'input window, operand 0']
    #allocation3 [shape = 's32[2]{0}', space=sflag, size = 0x8, scoped, tag = 'scoped memory for tpu_custom_call.1']
    #allocation4 [shape = 's32[2]{0}', space=sflag, size = 0x8, scoped, tag = 'scoped memory for tpu_custom_call.1']
    #allocation5 [shape = 'u8[131072]{0}', space=vmem, size = 0x20000, scoped, tag = 'input window, operand 1']
    #allocation6 [shape = 's32[2]{0}', space=sflag, size = 0x8, scoped, tag = 'scoped memory for tpu_custom_call.1']
    #allocation7 [shape = 'u8[32768]{0}', space=vmem, size = 0x8000, scoped, tag = 'input window, operand 2']
    #allocation8 [shape = 'u8[131072]{0}', space=vmem, size = 0x20000, scoped, tag = 'output window, operand 0']
    #allocation9 [shape = 'u8[131072]{0}', space=vmem, size = 0x20000, scoped, tag = 'output window, operand 1']
    #allocation10 [shape = 's32[2]{0}', space=sflag, size = 0x8, scoped, tag = 'scoped memory for tpu_custom_call.1']
    %10 = vsyncpa [#allocation3], 0
    %s11 = scalar_lea.sflag [#allocation3], 1
    %12 = vsyncpa %s11, 0
    %13 = vsyncpa [#allocation6], 0
    %s14 = scalar_lea.sflag [#allocation6], 1
    %15 = vsyncpa %s14, 0
    %16 = vsyncpa [#allocation4], 0
    %s17 = scalar_lea.sflag [#allocation4], 1
    %18 = vsyncpa %s17, 0
    %19 = vsyncpa [#allocation10], 0
    %s20 = scalar_lea.sflag [#allocation10], 1
    %21 = vsyncpa %s20, 0
    loop: start=0, step=1, limit=4
    $region2: #{tpu_custom_call.1} parent=1 // loop_pre_header
      _
    $region3: #{tpu_custom_call.1} parent=1 // loop_header
      %s23 = sphi 0, %s27
      %p24 = scmp.ge.s32.totalorder %s23, 4
      %s33 = sphi 0, %s35
      %s36 = sphi 0, %s33
      %s37 = sphi 0, %s36
      %s53 = sphi 0, %s37
      %s59 = sphi 0, %s61
      %s62 = sphi 0, %s59
      %s63 = sphi 0, %s62
      %s79 = sphi 0, %s63
      %s85 = sphi 0, %s87
      %s88 = sphi 0, %s85
      %s89 = sphi 0, %s88
      %s105 = sphi 0, %s89
      %s111 = sphi 0, %s113
      %s114 = sphi 0, %s111
      %s115 = sphi 0, %s114
      %s131 = sphi 0, %s115
      %s137 = sphi 0, %s139
      %s140 = sphi 0, %s137
      %s141 = sphi 0, %s140
      %s157 = sphi 0, %s141
    $region4: #{tpu_custom_call.1} parent=1 // loop_header_branch
      %26 = sbr.rel (%p24) target = $region8
    $region5: #{tpu_custom_call.1} parent=1 // loop_body
      %s28 = ssub.s32 %s23, 1
      %s29 = ssub.s32 %s23, 2
      %s30 = sadd.s32 %s23, 1
      %s31 = ssub.s32 %s23, %s30
      %p32 = scmp.eq.s32.totalorder %s31, 0
      %s34 = sadd.s32 %s33, 1
      %s35 = scalar_select %p32, %s33, %s34
      %p38 = pneg %p32
      %p39 = scmp.eq.s32.totalorder %s23, 1
      %p40 = por %p38, %p39
      %p41 = scmp.ne.s32.totalorder %s33, %s36
      %p42 = scmp.eq.s32.totalorder %s23, 0
      %p43 = por %p41, %p42
      %p44 = scmp.ne.s32.totalorder %s33, %s36
      %p45 = scmp.eq.s32.totalorder %s28, 1
      %p46 = por %p44, %p45
      %p47 = scmp.ne.s32.totalorder %s36, %s37
      %p48 = scmp.eq.s32.totalorder %s28, 0
      %p49 = por %p47, %p48
      %p50 = scmp.ne.s32.totalorder %s36, %s37
      %p51 = scmp.eq.s32.totalorder %s29, 1
      %p52 = por %p50, %p51
      %p54 = scmp.ne.s32.totalorder %s37, %s53
      %p55 = scmp.eq.s32.totalorder %s29, 0
      %p56 = por %p54, %p55
      %s57 = ssub.s32 %s23, %s30
      %p58 = scmp.eq.s32.totalorder %s57, 0
      %s60 = sadd.s32 %s59, 1
      %s61 = scalar_select %p58, %s59, %s60
      %p64 = pneg %p58
      %p65 = scmp.eq.s32.totalorder %s23, 1
      %p66 = por %p64, %p65
      %p67 = scmp.ne.s32.totalorder %s59, %s62
      %p68 = scmp.eq.s32.totalorder %s23, 0
      %p69 = por %p67, %p68
      %p70 = scmp.ne.s32.totalorder %s59, %s62
      %p71 = scmp.eq.s32.totalorder %s28, 1
      %p72 = por %p70, %p71
      %p73 = scmp.ne.s32.totalorder %s62, %s63
      %p74 = scmp.eq.s32.totalorder %s28, 0
      %p75 = por %p73, %p74
      %p76 = scmp.ne.s32.totalorder %s62, %s63
      %p77 = scmp.eq.s32.totalorder %s29, 1
      %p78 = por %p76, %p77
      %p80 = scmp.ne.s32.totalorder %s63, %s79
      %p81 = scmp.eq.s32.totalorder %s29, 0
      %p82 = por %p80, %p81
      %s83 = ssub.s32 %s23, %s30
      %p84 = scmp.eq.s32.totalorder %s83, 0
      %s86 = sadd.s32 %s85, 1
      %s87 = scalar_select %p84, %s85, %s86
      %p90 = pneg %p84
      %p91 = scmp.eq.s32.totalorder %s23, 1
      %p92 = por %p90, %p91
      %p93 = scmp.ne.s32.totalorder %s85, %s88
      %p94 = scmp.eq.s32.totalorder %s23, 0
      %p95 = por %p93, %p94
      %p96 = scmp.ne.s32.totalorder %s85, %s88
      %p97 = scmp.eq.s32.totalorder %s28, 1
      %p98 = por %p96, %p97
      %p99 = scmp.ne.s32.totalorder %s88, %s89
      %p100 = scmp.eq.s32.totalorder %s28, 0
      %p101 = por %p99, %p100
      %p102 = scmp.ne.s32.totalorder %s88, %s89
      %p103 = scmp.eq.s32.totalorder %s29, 1
      %p104 = por %p102, %p103
      %p106 = scmp.ne.s32.totalorder %s89, %s105
      %p107 = scmp.eq.s32.totalorder %s29, 0
      %p108 = por %p106, %p107
      %s109 = ssub.s32 %s23, %s30
      %p110 = scmp.eq.s32.totalorder %s109, 0
      %s112 = sadd.s32 %s111, 1
      %s113 = scalar_select %p110, %s111, %s112
      %p116 = pneg %p110
      %p117 = scmp.eq.s32.totalorder %s23, 1
      %p118 = por %p116, %p117
      %p119 = scmp.ne.s32.totalorder %s111, %s114
      %p120 = scmp.eq.s32.totalorder %s23, 0
      %p121 = por %p119, %p120
      %p122 = scmp.ne.s32.totalorder %s111, %s114
      %p123 = scmp.eq.s32.totalorder %s28, 1
      %p124 = por %p122, %p123
      %p125 = scmp.ne.s32.totalorder %s114, %s115
      %p126 = scmp.eq.s32.totalorder %s28, 0
      %p127 = por %p125, %p126
      %p128 = scmp.ne.s32.totalorder %s114, %s115
      %p129 = scmp.eq.s32.totalorder %s29, 1
      %p130 = por %p128, %p129
      %p132 = scmp.ne.s32.totalorder %s115, %s131
      %p133 = scmp.eq.s32.totalorder %s29, 0
      %p134 = por %p132, %p133
      %s135 = ssub.s32 %s23, %s30
      %p136 = scmp.eq.s32.totalorder %s135, 0
      %s138 = sadd.s32 %s137, 1
      %s139 = scalar_select %p136, %s137, %s138
      %p142 = pneg %p136
      %p143 = scmp.eq.s32.totalorder %s23, 1
      %p144 = por %p142, %p143
      %p145 = scmp.ne.s32.totalorder %s137, %s140
      %p146 = scmp.eq.s32.totalorder %s23, 0
      %p147 = por %p145, %p146
      %p148 = scmp.ne.s32.totalorder %s137, %s140
      %p149 = scmp.eq.s32.totalorder %s28, 1
      %p150 = por %p148, %p149
      %p151 = scmp.ne.s32.totalorder %s140, %s141
      %p152 = scmp.eq.s32.totalorder %s28, 0
      %p153 = por %p151, %p152
      %p154 = scmp.ne.s32.totalorder %s140, %s141
      %p155 = scmp.eq.s32.totalorder %s29, 1
      %p156 = por %p154, %p155
      %p158 = scmp.ne.s32.totalorder %s141, %s157
      %p159 = scmp.eq.s32.totalorder %s29, 0
      %p160 = por %p158, %p159
      %p161 = scmp.le.s32.totalorder 1, %s23
      %p162 = scmp.lt.s32.totalorder %s23, 3
      %p163 = pnand %p161, %p162
      %p164 = pneg %p163
      // Predicated region
      $region9: #{tpu_custom_call.1} parent=5 // pred_check
        _
      $region10: #{tpu_custom_call.1} parent=5 // pred_check_branch
        %166 = sbr.rel (%p163) target = $region12
      $region11: #{tpu_custom_call.1} parent=5 // pred_region
        %s167 = ssub.s32 %s23, 1
      $region12: #{tpu_custom_call.1} parent=5 // pred_fallthru
        _
      %p168 = scmp.lt.s32.totalorder %s23, 2
      // Predicated region
      $region13: #{tpu_custom_call.1} parent=5 // pred_check
        %p169 = pneg %p168
      $region14: #{tpu_custom_call.1} parent=5 // pred_check_branch
        %171 = sbr.rel (%p169) target = $region16
      $region15: #{tpu_custom_call.1} parent=5 // pred_region
        // Predicated region
        $region17: #{tpu_custom_call.1} parent=15 // pred_check
          %p172 = pneg %p43
        $region18: #{tpu_custom_call.1} parent=15 // pred_check_branch
          %174 = sbr.rel (%p172) target = $region20
        $region19: #{tpu_custom_call.1} parent=15 // pred_region
          %s175 = sand.u32 %s33, 1
          %s176 = scalar_lea.sflag [#allocation3], %s175
          %s177 = sand.u32 %s33, 1
          %s178 = smul.addr %s177, 128
          %s179 = scalar_lea.vmem [#allocation2], %s178
          %s180 = smul.u32 8, %s23
          %s182 = ssub.s32 2048, 2048
          %183 = vsyncadd %s176, %s182
          %s184 = smul.addr %s180, 2
          %s185 = smul.addr %s184, 128
          %s186 = scalar_lea.hbm %s0, %s185
          %s187 = sshll.u32 %s179, 4
          %s188 = int_to_ptr.vmem [resolvable:$true] %s187
          %193 = dma.hbm_to_vmem [thread:$0]  %s186, 2048, %s188, %s176, 256, 256, 16
        $region20: #{tpu_custom_call.1} parent=15 // pred_fallthru
          _
        // Predicated region
        $region21: #{tpu_custom_call.1} parent=15 // pred_check
          %p194 = pneg %p69
        $region22: #{tpu_custom_call.1} parent=15 // pred_check_branch
          %196 = sbr.rel (%p194) target = $region24
        $region23: #{tpu_custom_call.1} parent=15 // pred_region
          %s197 = sand.u32 %s23, 1
          %s198 = scalar_lea.sflag [#allocation6], %s197
          %s199 = sand.u32 %s59, 1
          %s200 = smul.addr %s199, 128
          %s201 = scalar_lea.vmem [#allocation5], %s200
          %s202 = smul.u32 8, %s23
          %s204 = ssub.s32 2048, 2048
          %205 = vsyncadd %s198, %s204
          %s206 = smul.addr %s202, 2
          %s207 = smul.addr %s206, 128
          %s208 = scalar_lea.hbm %s1, %s207
          %s209 = sshll.u32 %s201, 4
          %s210 = int_to_ptr.vmem [resolvable:$true] %s209
          %215 = dma.hbm_to_vmem [thread:$0]  %s208, 2048, %s210, %s198, 256, 256, 16
        $region24: #{tpu_custom_call.1} parent=15 // pred_fallthru
          _
        // Predicated region
        $region25: #{tpu_custom_call.1} parent=15 // pred_check
          %p216 = pneg %p95
        $region26: #{tpu_custom_call.1} parent=15 // pred_check_branch
          %218 = sbr.rel (%p216) target = $region28
        $region27: #{tpu_custom_call.1} parent=15 // pred_region
          %s219 = sand.u32 %s23, 1
          %s220 = scalar_lea.sflag [#allocation6], %s219
          %s221 = sand.u32 %s85, 1
          %s222 = smul.addr %s221, 32
          %s223 = scalar_lea.vmem [#allocation7], %s222
          %s224 = smul.u32 2, %s23
          %s226 = ssub.s32 512, 512
          %227 = vsyncadd %s220, %s226
          %s228 = smul.addr %s224, 2
          %s229 = smul.addr %s228, 128
          %s230 = scalar_lea.hbm %s2, %s229
          %s231 = sshll.u32 %s223, 4
          %s232 = int_to_ptr.vmem [resolvable:$true] %s231
          %237 = dma.hbm_to_vmem [thread:$0]  %s230, 512, %s232, %s220, 256, 256, 16
        $region28: #{tpu_custom_call.1} parent=15 // pred_fallthru
          _
      $region16: #{tpu_custom_call.1} parent=5 // pred_fallthru
        _
      %p238 = scmp.le.s32.totalorder 1, %s23
      %p239 = scmp.lt.s32.totalorder %s23, 3
      %p240 = pnand %p238, %p239
      %p241 = pneg %p240
      // Predicated region
      $region29: #{tpu_custom_call.1} parent=5 // pred_check
        _
      $region30: #{tpu_custom_call.1} parent=5 // pred_check_branch
        %243 = sbr.rel (%p240) target = $region32
      $region31: #{tpu_custom_call.1} parent=5 // pred_region
        %s244 = ssub.s32 %s23, 1
        %s245 = sand.u32 %s36, 1
        %s246 = scalar_lea.sflag [#allocation3], %s245
        %s247 = sand.u32 %s36, 1
        %s248 = smul.addr %s247, 128
        %s249 = scalar_lea.vmem [#allocation2], %s248
        // Predicated region
        $region33: #{tpu_custom_call.1} parent=31 // pred_check
          %p250 = pneg %p49
        $region34: #{tpu_custom_call.1} parent=31 // pred_check_branch
          %252 = sbr.rel (%p250) target = $region36
        $region35: #{tpu_custom_call.1} parent=31 // pred_region
          %253 = dma.done %s246, 2048
        $region36: #{tpu_custom_call.1} parent=31 // pred_fallthru
          _
        %s254 = sand.u32 %s28, 1
        %s255 = scalar_lea.sflag [#allocation6], %s254
        %s256 = sand.u32 %s62, 1
        %s257 = smul.addr %s256, 128
        %s258 = scalar_lea.vmem [#allocation5], %s257
        // Predicated region
        $region37: #{tpu_custom_call.1} parent=31 // pred_check
          %p259 = pneg %p75
        $region38: #{tpu_custom_call.1} parent=31 // pred_check_branch
          %261 = sbr.rel (%p259) target = $region40
        $region39: #{tpu_custom_call.1} parent=31 // pred_region
          %262 = dma.done %s255, 2048
        $region40: #{tpu_custom_call.1} parent=31 // pred_fallthru
          _
        %s263 = sand.u32 %s28, 1
        %s264 = scalar_lea.sflag [#allocation6], %s263
        %s265 = sand.u32 %s88, 1
        %s266 = smul.addr %s265, 32
        %s267 = scalar_lea.vmem [#allocation7], %s266
        // Predicated region
        $region41: #{tpu_custom_call.1} parent=31 // pred_check
          %p268 = pneg %p101
        $region42: #{tpu_custom_call.1} parent=31 // pred_check_branch
          %270 = sbr.rel (%p268) target = $region44
        $region43: #{tpu_custom_call.1} parent=31 // pred_region
          %271 = dma.done %s264, 512
        $region44: #{tpu_custom_call.1} parent=31 // pred_fallthru
          _
        %s272 = sand.u32 %s36, 1
        %s273 = scalar_lea.sflag [#allocation3], %s272
        %s274 = sand.u32 %s36, 1
        %s275 = smul.addr %s274, 128
        %s276 = scalar_lea.vmem [#allocation2], %s275
        %p277 = pneg %p49
        %p278 = pneg %p46
        %s279 = sand.u32 %s28, 1
        %s280 = scalar_lea.sflag [#allocation6], %s279
        %s281 = sand.u32 %s62, 1
        %s282 = smul.addr %s281, 128
        %s283 = scalar_lea.vmem [#allocation5], %s282
        %p284 = pneg %p75
        %p285 = pneg %p72
        %s286 = sand.u32 %s28, 1
        %s287 = scalar_lea.sflag [#allocation6], %s286
        %s288 = sand.u32 %s88, 1
        %s289 = smul.addr %s288, 32
        %s290 = scalar_lea.vmem [#allocation7], %s289
        %p291 = pneg %p101
        %p292 = pneg %p98
        %p293 = pneg %p127
        %p294 = pneg %p124
        %s295 = sand.u32 %s114, 1
        %s296 = scalar_lea.sflag [#allocation4], %s295
        %s297 = sand.u32 %s114, 1
        %s298 = smul.addr %s297, 128
        %s299 = scalar_lea.vmem [#allocation8], %s298
        %p300 = pneg %p153
        %p301 = pneg %p150
        %s302 = sand.u32 %s140, 1
        %s303 = scalar_lea.sflag [#allocation10], %s302
        %s304 = sand.u32 %s140, 1
        %s305 = smul.addr %s304, 128
        %s306 = scalar_lea.vmem [#allocation9], %s305
        %s307 = smul.u32 8, %s28
        %s308 = smul.u32 8, %s28
        %s309 = smul.u32 2, %s28
        %s310 = smul.u32 8, %s28
        %s311 = smul.u32 8, %s28
        %v312 = vld [vmem:[%s249] sm:$0xff]
        %v313 = vld [vmem:[%s249 + $0x8] sm:$0xff]
        %v314 = vld [vmem:[%s249 + $0x10] sm:$0xff]
        %v315 = vld [vmem:[%s249 + $0x18] sm:$0xff]
        %v316 = vld [vmem:[%s249 + $0x20] sm:$0xff]
        %v317 = vld [vmem:[%s249 + $0x28] sm:$0xff]
        %v318 = vld [vmem:[%s249 + $0x30] sm:$0xff]
        %v319 = vld [vmem:[%s249 + $0x38] sm:$0xff]
        %v320 = vld [vmem:[%s249 + $0x40] sm:$0xff]
        %v321 = vld [vmem:[%s249 + $0x48] sm:$0xff]
        %v322 = vld [vmem:[%s249 + $0x50] sm:$0xff]
        %v323 = vld [vmem:[%s249 + $0x58] sm:$0xff]
        %v324 = vld [vmem:[%s249 + $0x60] sm:$0xff]
        %v325 = vld [vmem:[%s249 + $0x68] sm:$0xff]
        %v326 = vld [vmem:[%s249 + $0x70] sm:$0xff]
        %v327 = vld [vmem:[%s249 + $0x78] sm:$0xff]
        %v328 = vld [vmem:[%s267] sm:$0xff]
        %v329 = vld [vmem:[%s267 + $0x8] sm:$0xff]
        %v330 = vld [vmem:[%s267 + $0x10] sm:$0xff]
        %v331 = vld [vmem:[%s267 + $0x18] sm:$0xff]
        %v332 = vunpack.c.0.s8 %v328
        %v333 = vunpack.c.0.s8 %v329
        %v334 = vunpack.c.1.s8 %v328
        %v335 = vunpack.c.1.s8 %v329
        %v336 = vunpack.c.2.s8 %v328
        %v337 = vunpack.c.2.s8 %v329
        %v338 = vunpack.c.3.s8 %v328
        %v339 = vunpack.c.3.s8 %v329
        %v340 = vunpack.c.0.s8 %v330
        %v341 = vunpack.c.0.s8 %v331
        %v342 = vunpack.c.1.s8 %v330
        %v343 = vunpack.c.1.s8 %v331
        %v344 = vunpack.c.2.s8 %v330
        %v345 = vunpack.c.2.s8 %v331
        %v346 = vunpack.c.3.s8 %v330
        %v347 = vunpack.c.3.s8 %v331
        %v348 = vand.u32 %v332, 1
        %v349 = vand.u32 %v333, 1
        %v350 = vand.u32 %v334, 1
        %v351 = vand.u32 %v335, 1
        %v352 = vand.u32 %v336, 1
        %v353 = vand.u32 %v337, 1
        %v354 = vand.u32 %v338, 1
        %v355 = vand.u32 %v339, 1
        %v356 = vand.u32 %v340, 1
        %v357 = vand.u32 %v341, 1
        %v358 = vand.u32 %v342, 1
        %v359 = vand.u32 %v343, 1
        %v360 = vand.u32 %v344, 1
        %v361 = vand.u32 %v345, 1
        %v362 = vand.u32 %v346, 1
        %v363 = vand.u32 %v347, 1
        %v364 = vshra.s32 %v332, 1
        %v365 = vshra.s32 %v333, 1
        %v366 = vshra.s32 %v334, 1
        %v367 = vshra.s32 %v335, 1
        %v368 = vshra.s32 %v336, 1
        %v369 = vshra.s32 %v337, 1
        %v370 = vshra.s32 %v338, 1
        %v371 = vshra.s32 %v339, 1
        %v372 = vshra.s32 %v340, 1
        %v373 = vshra.s32 %v341, 1
        %v374 = vshra.s32 %v342, 1
        %v375 = vshra.s32 %v343, 1
        %v376 = vshra.s32 %v344, 1
        %v377 = vshra.s32 %v345, 1
        %v378 = vshra.s32 %v346, 1
        %v379 = vshra.s32 %v347, 1
        %vm380 = vcmp.eq.s32.totalorder %v348, 0
        %vm381 = vcmp.eq.s32.totalorder %v349, 0
        %vm382 = vcmp.eq.s32.totalorder %v350, 0
        %vm383 = vcmp.eq.s32.totalorder %v351, 0
        %vm384 = vcmp.eq.s32.totalorder %v352, 0
        %vm385 = vcmp.eq.s32.totalorder %v353, 0
        %vm386 = vcmp.eq.s32.totalorder %v354, 0
        %vm387 = vcmp.eq.s32.totalorder %v355, 0
        %vm388 = vcmp.eq.s32.totalorder %v356, 0
        %vm389 = vcmp.eq.s32.totalorder %v357, 0
        %vm390 = vcmp.eq.s32.totalorder %v358, 0
        %vm391 = vcmp.eq.s32.totalorder %v359, 0
        %vm392 = vcmp.eq.s32.totalorder %v360, 0
        %vm393 = vcmp.eq.s32.totalorder %v361, 0
        %vm394 = vcmp.eq.s32.totalorder %v362, 0
        %vm395 = vcmp.eq.s32.totalorder %v363, 0
        %v396 = vld [vmem:[%s258] sm:$0xff]
        %v397 = vld [vmem:[%s258 + $0x8] sm:$0xff]
        %v398 = vld [vmem:[%s258 + $0x10] sm:$0xff]
        %v399 = vld [vmem:[%s258 + $0x18] sm:$0xff]
        %v400 = vld [vmem:[%s258 + $0x20] sm:$0xff]
        %v401 = vld [vmem:[%s258 + $0x28] sm:$0xff]
        %v402 = vld [vmem:[%s258 + $0x30] sm:$0xff]
        %v403 = vld [vmem:[%s258 + $0x38] sm:$0xff]
        %v404 = vld [vmem:[%s258 + $0x40] sm:$0xff]
        %v405 = vld [vmem:[%s258 + $0x48] sm:$0xff]
        %v406 = vld [vmem:[%s258 + $0x50] sm:$0xff]
        %v407 = vld [vmem:[%s258 + $0x58] sm:$0xff]
        %v408 = vld [vmem:[%s258 + $0x60] sm:$0xff]
        %v409 = vld [vmem:[%s258 + $0x68] sm:$0xff]
        %v410 = vld [vmem:[%s258 + $0x70] sm:$0xff]
        %v411 = vld [vmem:[%s258 + $0x78] sm:$0xff]
        %v412 = vsel %vm380, %v312, %v396
        %v413 = vsel %vm381, %v313, %v397
        %v414 = vsel %vm382, %v314, %v398
        %v415 = vsel %vm383, %v315, %v399
        %v416 = vsel %vm384, %v316, %v400
        %v417 = vsel %vm385, %v317, %v401
        %v418 = vsel %vm386, %v318, %v402
        %v419 = vsel %vm387, %v319, %v403
        %v420 = vsel %vm388, %v320, %v404
        %v421 = vsel %vm389, %v321, %v405
        %v422 = vsel %vm390, %v322, %v406
        %v423 = vsel %vm391, %v323, %v407
        %v424 = vsel %vm392, %v324, %v408
        %v425 = vsel %vm393, %v325, %v409
        %v426 = vsel %vm394, %v326, %v410
        %v427 = vsel %vm395, %v327, %v411
        %v428 = vrot.slane %v312, 7
        %v429 = vrot.slane %v313, 7
        %v430 = vrot.slane %v314, 7
        %v431 = vrot.slane %v315, 7
        %v432 = vrot.slane %v316, 7
        %v433 = vrot.slane %v317, 7
        %v434 = vrot.slane %v318, 7
        %v435 = vrot.slane %v319, 7
        %v436 = vrot.slane %v320, 7
        %v437 = vrot.slane %v321, 7
        %v438 = vrot.slane %v322, 7
        %v439 = vrot.slane %v323, 7
        %v440 = vrot.slane %v324, 7
        %v441 = vrot.slane %v325, 7
        %v442 = vrot.slane %v326, 7
        %v443 = vrot.slane %v327, 7
        %v444 = vlaneseq
        %v445 = vshrl.u32 %v444, 7
        %vm446 = vcmp.lt.s32.totalorder %v445, 1
        %v447 = vsel %vm446, %v440, %v442
        %v448 = vsel %vm446, %v441, %v443
        %v449 = vsel %vm446, %v438, %v440
        %v450 = vsel %vm446, %v439, %v441
        %v451 = vsel %vm446, %v436, %v438
        %v452 = vsel %vm446, %v437, %v439
        %v453 = vsel %vm446, %v434, %v436
        %v454 = vsel %vm446, %v435, %v437
        %v455 = vsel %vm446, %v432, %v434
        %v456 = vsel %vm446, %v433, %v435
        %v457 = vsel %vm446, %v430, %v432
        %v458 = vsel %vm446, %v431, %v433
        %v459 = vsel %vm446, %v428, %v430
        %v460 = vsel %vm446, %v429, %v431
        %v461 = vsel %vm446, %v442, %v428
        %v462 = vsel %vm446, %v443, %v429
        %v463 = vrot.slane %v312, 1
        %v464 = vrot.slane %v313, 1
        %v465 = vrot.slane %v314, 1
        %v466 = vrot.slane %v315, 1
        %v467 = vrot.slane %v316, 1
        %v468 = vrot.slane %v317, 1
        %v469 = vrot.slane %v318, 1
        %v470 = vrot.slane %v319, 1
        %v471 = vrot.slane %v320, 1
        %v472 = vrot.slane %v321, 1
        %v473 = vrot.slane %v322, 1
        %v474 = vrot.slane %v323, 1
        %v475 = vrot.slane %v324, 1
        %v476 = vrot.slane %v325, 1
        %v477 = vrot.slane %v326, 1
        %v478 = vrot.slane %v327, 1
        %vm479 = vcmp.lt.s32.totalorder %v445, 7
        %v480 = vsel %vm479, %v475, %v477
        %v481 = vsel %vm479, %v476, %v478
        %v482 = vsel %vm479, %v473, %v475
        %v483 = vsel %vm479, %v474, %v476
        %v484 = vsel %vm479, %v471, %v473
        %v485 = vsel %vm479, %v472, %v474
        %v486 = vsel %vm479, %v469, %v471
        %v487 = vsel %vm479, %v470, %v472
        %v488 = vsel %vm479, %v467, %v469
        %v489 = vsel %vm479, %v468, %v470
        %v490 = vsel %vm479, %v465, %v467
        %v491 = vsel %vm479, %v466, %v468
        %v492 = vsel %vm479, %v463, %v465
        %v493 = vsel %vm479, %v464, %v466
        %v494 = vsel %vm479, %v477, %v463
        %v495 = vsel %vm479, %v478, %v464
        %vm496 = vcmp.eq.s32.totalorder %v364, 1
        %vm497 = vcmp.eq.s32.totalorder %v365, 1
        %vm498 = vcmp.eq.s32.totalorder %v366, 1
        %vm499 = vcmp.eq.s32.totalorder %v367, 1
        %vm500 = vcmp.eq.s32.totalorder %v368, 1
        %vm501 = vcmp.eq.s32.totalorder %v369, 1
        %vm502 = vcmp.eq.s32.totalorder %v370, 1
        %vm503 = vcmp.eq.s32.totalorder %v371, 1
        %vm504 = vcmp.eq.s32.totalorder %v372, 1
        %vm505 = vcmp.eq.s32.totalorder %v373, 1
        %vm506 = vcmp.eq.s32.totalorder %v374, 1
        %vm507 = vcmp.eq.s32.totalorder %v375, 1
        %vm508 = vcmp.eq.s32.totalorder %v376, 1
        %vm509 = vcmp.eq.s32.totalorder %v377, 1
        %vm510 = vcmp.eq.s32.totalorder %v378, 1
        %vm511 = vcmp.eq.s32.totalorder %v379, 1
        %v512 = vsel %vm496, %v461, %v492
        %v513 = vsel %vm497, %v462, %v493
        %v514 = vsel %vm498, %v459, %v490
        %v515 = vsel %vm499, %v460, %v491
        %v516 = vsel %vm500, %v457, %v488
        %v517 = vsel %vm501, %v458, %v489
        %v518 = vsel %vm502, %v455, %v486
        %v519 = vsel %vm503, %v456, %v487
        %v520 = vsel %vm504, %v453, %v484
        %v521 = vsel %vm505, %v454, %v485
        %v522 = vsel %vm506, %v451, %v482
        %v523 = vsel %vm507, %v452, %v483
        %v524 = vsel %vm508, %v449, %v480
        %v525 = vsel %vm509, %v450, %v481
        %v526 = vsel %vm510, %v447, %v494
        %v527 = vsel %vm511, %v448, %v495
        %vm528 = vcmp.eq.s32.totalorder %v364, 0
        %vm529 = vcmp.eq.s32.totalorder %v365, 0
        %vm530 = vcmp.eq.s32.totalorder %v366, 0
        %vm531 = vcmp.eq.s32.totalorder %v367, 0
        %vm532 = vcmp.eq.s32.totalorder %v368, 0
        %vm533 = vcmp.eq.s32.totalorder %v369, 0
        %vm534 = vcmp.eq.s32.totalorder %v370, 0
        %vm535 = vcmp.eq.s32.totalorder %v371, 0
        %vm536 = vcmp.eq.s32.totalorder %v372, 0
        %vm537 = vcmp.eq.s32.totalorder %v373, 0
        %vm538 = vcmp.eq.s32.totalorder %v374, 0
        %vm539 = vcmp.eq.s32.totalorder %v375, 0
        %vm540 = vcmp.eq.s32.totalorder %v376, 0
        %vm541 = vcmp.eq.s32.totalorder %v377, 0
        %vm542 = vcmp.eq.s32.totalorder %v378, 0
        %vm543 = vcmp.eq.s32.totalorder %v379, 0
        %vm544 = vcmp.eq.s32.totalorder %v364, 3
        %vm545 = vcmp.eq.s32.totalorder %v365, 3
        %vm546 = vcmp.eq.s32.totalorder %v366, 3
        %vm547 = vcmp.eq.s32.totalorder %v367, 3
        %vm548 = vcmp.eq.s32.totalorder %v368, 3
        %vm549 = vcmp.eq.s32.totalorder %v369, 3
        %vm550 = vcmp.eq.s32.totalorder %v370, 3
        %vm551 = vcmp.eq.s32.totalorder %v371, 3
        %vm552 = vcmp.eq.s32.totalorder %v372, 3
        %vm553 = vcmp.eq.s32.totalorder %v373, 3
        %vm554 = vcmp.eq.s32.totalorder %v374, 3
        %vm555 = vcmp.eq.s32.totalorder %v375, 3
        %vm556 = vcmp.eq.s32.totalorder %v376, 3
        %vm557 = vcmp.eq.s32.totalorder %v377, 3
        %vm558 = vcmp.eq.s32.totalorder %v378, 3
        %vm559 = vcmp.eq.s32.totalorder %v379, 3
        %v560 = vsel %vm544, 0.0, %v512
        %v561 = vsel %vm545, 0.0, %v513
        %v562 = vsel %vm546, 0.0, %v514
        %v563 = vsel %vm547, 0.0, %v515
        %v564 = vsel %vm548, 0.0, %v516
        %v565 = vsel %vm549, 0.0, %v517
        %v566 = vsel %vm550, 0.0, %v518
        %v567 = vsel %vm551, 0.0, %v519
        %v568 = vsel %vm552, 0.0, %v520
        %v569 = vsel %vm553, 0.0, %v521
        %v570 = vsel %vm554, 0.0, %v522
        %v571 = vsel %vm555, 0.0, %v523
        %v572 = vsel %vm556, 0.0, %v524
        %v573 = vsel %vm557, 0.0, %v525
        %v574 = vsel %vm558, 0.0, %v526
        %v575 = vsel %vm559, 0.0, %v527
        %v576 = vsel %vm528, %v312, %v560
        %v577 = vsel %vm529, %v313, %v561
        %v578 = vsel %vm530, %v314, %v562
        %v579 = vsel %vm531, %v315, %v563
        %v580 = vsel %vm532, %v316, %v564
        %v581 = vsel %vm533, %v317, %v565
        %v582 = vsel %vm534, %v318, %v566
        %v583 = vsel %vm535, %v319, %v567
        %v584 = vsel %vm536, %v320, %v568
        %v585 = vsel %vm537, %v321, %v569
        %v586 = vsel %vm538, %v322, %v570
        %v587 = vsel %vm539, %v323, %v571
        %v588 = vsel %vm540, %v324, %v572
        %v589 = vsel %vm541, %v325, %v573
        %v590 = vsel %vm542, %v326, %v574
        %v591 = vsel %vm543, %v327, %v575
        %v592 = vmul.f32 %v576, %v576
        %v593 = vmul.f32 %v577, %v577
        %v594 = vmul.f32 %v578, %v578
        %v595 = vmul.f32 %v579, %v579
        %v596 = vmul.f32 %v580, %v580
        %v597 = vmul.f32 %v581, %v581
        %v598 = vmul.f32 %v582, %v582
        %v599 = vmul.f32 %v583, %v583
        %v600 = vmul.f32 %v584, %v584
        %v601 = vmul.f32 %v585, %v585
        %v602 = vmul.f32 %v586, %v586
        %v603 = vmul.f32 %v587, %v587
        %v604 = vmul.f32 %v588, %v588
        %v605 = vmul.f32 %v589, %v589
        %v606 = vmul.f32 %v590, %v590
        %v607 = vmul.f32 %v591, %v591
        %v608 = vadd.f32 %v592, %v593
        %609 = vadd.xlane.f32.xlu0 %v608
        %v610 = vpop.xlane.xlu0 %609
        %v611 = vadd.f32 %v594, %v595
        %612 = vadd.xlane.f32.xlu0 %v611
        %v613 = vpop.xlane.xlu0 %612
        %v614 = vadd.f32 %v596, %v597
        %615 = vadd.xlane.f32.xlu0 %v614
        %v616 = vpop.xlane.xlu0 %615
        %v617 = vadd.f32 %v598, %v599
        %618 = vadd.xlane.f32.xlu0 %v617
        %v619 = vpop.xlane.xlu0 %618
        %v620 = vadd.f32 %v600, %v601
        %621 = vadd.xlane.f32.xlu0 %v620
        %v622 = vpop.xlane.xlu0 %621
        %v623 = vadd.f32 %v602, %v603
        %624 = vadd.xlane.f32.xlu0 %v623
        %v625 = vpop.xlane.xlu0 %624
        %v626 = vadd.f32 %v604, %v605
        %627 = vadd.xlane.f32.xlu0 %v626
        %v628 = vpop.xlane.xlu0 %627
        %v629 = vadd.f32 %v606, %v607
        %630 = vadd.xlane.f32.xlu0 %v629
        %v631 = vpop.xlane.xlu0 %630
        %v632 = vmax.f32 %v610, 1e-24
        %v633 = vmax.f32 %v613, 1e-24
        %v634 = vmax.f32 %v616, 1e-24
        %v635 = vmax.f32 %v619, 1e-24
        %v636 = vmax.f32 %v622, 1e-24
        %v637 = vmax.f32 %v625, 1e-24
        %v638 = vmax.f32 %v628, 1e-24
        %v639 = vmax.f32 %v631, 1e-24
        %v640 = vrsqrt.pop %v632
        %v641 = vrsqrt.pop %v633
        %v642 = vrsqrt.pop %v634
        %v643 = vrsqrt.pop %v635
        %v644 = vrsqrt.pop %v636
        %v645 = vrsqrt.pop %v637
        %v646 = vrsqrt.pop %v638
        %v647 = vrsqrt.pop %v639
        %v648 = vmul.f32 %v576, %v640
        %v649 = vmul.f32 %v577, %v640
        %v650 = vmul.f32 %v578, %v641
        %v651 = vmul.f32 %v579, %v641
        %v652 = vmul.f32 %v580, %v642
        %v653 = vmul.f32 %v581, %v642
        %v654 = vmul.f32 %v582, %v643
        %v655 = vmul.f32 %v583, %v643
        %v656 = vmul.f32 %v584, %v644
        %v657 = vmul.f32 %v585, %v644
        %v658 = vmul.f32 %v586, %v645
        %v659 = vmul.f32 %v587, %v645
        %v660 = vmul.f32 %v588, %v646
        %v661 = vmul.f32 %v589, %v646
        %v662 = vmul.f32 %v590, %v647
        %v663 = vmul.f32 %v591, %v647
        %664 = vst [vmem:[%s299] sm:$0xff] %v648
        %665 = vst [vmem:[%s299 + $0x8] sm:$0xff] %v649
        %666 = vst [vmem:[%s299 + $0x10] sm:$0xff] %v650
        %667 = vst [vmem:[%s299 + $0x18] sm:$0xff] %v651
        %668 = vst [vmem:[%s299 + $0x20] sm:$0xff] %v652
        %669 = vst [vmem:[%s299 + $0x28] sm:$0xff] %v653
        %670 = vst [vmem:[%s299 + $0x30] sm:$0xff] %v654
        %671 = vst [vmem:[%s299 + $0x38] sm:$0xff] %v655
        %672 = vst [vmem:[%s299 + $0x40] sm:$0xff] %v656
        %673 = vst [vmem:[%s299 + $0x48] sm:$0xff] %v657
        %674 = vst [vmem:[%s299 + $0x50] sm:$0xff] %v658
        %675 = vst [vmem:[%s299 + $0x58] sm:$0xff] %v659
        %676 = vst [vmem:[%s299 + $0x60] sm:$0xff] %v660
        %677 = vst [vmem:[%s299 + $0x68] sm:$0xff] %v661
        %678 = vst [vmem:[%s299 + $0x70] sm:$0xff] %v662
        %679 = vst [vmem:[%s299 + $0x78] sm:$0xff] %v663
        %v680 = vmul.f32 %v412, %v412
        %v681 = vmul.f32 %v413, %v413
        %v682 = vmul.f32 %v414, %v414
        %v683 = vmul.f32 %v415, %v415
        %v684 = vmul.f32 %v416, %v416
        %v685 = vmul.f32 %v417, %v417
        %v686 = vmul.f32 %v418, %v418
        %v687 = vmul.f32 %v419, %v419
        %v688 = vmul.f32 %v420, %v420
        %v689 = vmul.f32 %v421, %v421
        %v690 = vmul.f32 %v422, %v422
        %v691 = vmul.f32 %v423, %v423
        %v692 = vmul.f32 %v424, %v424
        %v693 = vmul.f32 %v425, %v425
        %v694 = vmul.f32 %v426, %v426
        %v695 = vmul.f32 %v427, %v427
        %v696 = vadd.f32 %v680, %v681
        %697 = vadd.xlane.f32.xlu0 %v696
        %v698 = vpop.xlane.xlu0 %697
        %v699 = vadd.f32 %v682, %v683
        %700 = vadd.xlane.f32.xlu0 %v699
        %v701 = vpop.xlane.xlu0 %700
        %v702 = vadd.f32 %v684, %v685
        %703 = vadd.xlane.f32.xlu0 %v702
        %v704 = vpop.xlane.xlu0 %703
        %v705 = vadd.f32 %v686, %v687
        %706 = vadd.xlane.f32.xlu0 %v705
        %v707 = vpop.xlane.xlu0 %706
        %v708 = vadd.f32 %v688, %v689
        %709 = vadd.xlane.f32.xlu0 %v708
        %v710 = vpop.xlane.xlu0 %709
        %v711 = vadd.f32 %v690, %v691
        %712 = vadd.xlane.f32.xlu0 %v711
        %v713 = vpop.xlane.xlu0 %712
        %v714 = vadd.f32 %v692, %v693
        %715 = vadd.xlane.f32.xlu0 %v714
        %v716 = vpop.xlane.xlu0 %715
        %v717 = vadd.f32 %v694, %v695
        %718 = vadd.xlane.f32.xlu0 %v717
        %v719 = vpop.xlane.xlu0 %718
        %v720 = vmax.f32 %v698, 1e-24
        %v721 = vmax.f32 %v701, 1e-24
        %v722 = vmax.f32 %v704, 1e-24
        %v723 = vmax.f32 %v707, 1e-24
        %v724 = vmax.f32 %v710, 1e-24
        %v725 = vmax.f32 %v713, 1e-24
        %v726 = vmax.f32 %v716, 1e-24
        %v727 = vmax.f32 %v719, 1e-24
        %v728 = vrsqrt.pop %v720
        %v729 = vrsqrt.pop %v721
        %v730 = vrsqrt.pop %v722
        %v731 = vrsqrt.pop %v723
        %v732 = vrsqrt.pop %v724
        %v733 = vrsqrt.pop %v725
        %v734 = vrsqrt.pop %v726
        %v735 = vrsqrt.pop %v727
        %v736 = vmul.f32 %v412, %v728
        %v737 = vmul.f32 %v413, %v728
        %v738 = vmul.f32 %v414, %v729
        %v739 = vmul.f32 %v415, %v729
        %v740 = vmul.f32 %v416, %v730
        %v741 = vmul.f32 %v417, %v730
        %v742 = vmul.f32 %v418, %v731
        %v743 = vmul.f32 %v419, %v731
        %v744 = vmul.f32 %v420, %v732
        %v745 = vmul.f32 %v421, %v732
        %v746 = vmul.f32 %v422, %v733
        %v747 = vmul.f32 %v423, %v733
        %v748 = vmul.f32 %v424, %v734
        %v749 = vmul.f32 %v425, %v734
        %v750 = vmul.f32 %v426, %v735
        %v751 = vmul.f32 %v427, %v735
        %752 = vst [vmem:[%s306] sm:$0xff] %v736
        %753 = vst [vmem:[%s306 + $0x8] sm:$0xff] %v737
        %754 = vst [vmem:[%s306 + $0x10] sm:$0xff] %v738
        %755 = vst [vmem:[%s306 + $0x18] sm:$0xff] %v739
        %756 = vst [vmem:[%s306 + $0x20] sm:$0xff] %v740
        %757 = vst [vmem:[%s306 + $0x28] sm:$0xff] %v741
        %758 = vst [vmem:[%s306 + $0x30] sm:$0xff] %v742
        %759 = vst [vmem:[%s306 + $0x38] sm:$0xff] %v743
        %760 = vst [vmem:[%s306 + $0x40] sm:$0xff] %v744
        %761 = vst [vmem:[%s306 + $0x48] sm:$0xff] %v745
        %762 = vst [vmem:[%s306 + $0x50] sm:$0xff] %v746
        %763 = vst [vmem:[%s306 + $0x58] sm:$0xff] %v747
        %764 = vst [vmem:[%s306 + $0x60] sm:$0xff] %v748
        %765 = vst [vmem:[%s306 + $0x68] sm:$0xff] %v749
        %766 = vst [vmem:[%s306 + $0x70] sm:$0xff] %v750
        %767 = vst [vmem:[%s306 + $0x78] sm:$0xff] %v751
        %s768 = sand.u32 %s114, 1
        %s769 = scalar_lea.sflag [#allocation4], %s768
        %s770 = sand.u32 %s114, 1
        %s771 = smul.addr %s770, 128
        %s772 = scalar_lea.vmem [#allocation8], %s771
        %s773 = sand.u32 %s140, 1
        %s774 = scalar_lea.sflag [#allocation10], %s773
        %s775 = sand.u32 %s140, 1
        %s776 = smul.addr %s775, 128
        %s777 = scalar_lea.vmem [#allocation9], %s776
        // Predicated region
        $region45: #{tpu_custom_call.1} parent=31 // pred_check
          %p778 = pneg %p124
        $region46: #{tpu_custom_call.1} parent=31 // pred_check_branch
          %780 = sbr.rel (%p778) target = $region48
        $region47: #{tpu_custom_call.1} parent=31 // pred_region
          %s781 = smul.u32 8, %s28
          %s783 = ssub.s32 2048, 2048
          %784 = vsyncadd %s769, %s783
          %s785 = smul.addr %s781, 2
          %s786 = smul.addr %s785, 128
          %s787 = scalar_lea.hbm %s3, %s786
          %s788 = sshll.u32 %s772, 4
          %s789 = int_to_ptr.vmem [resolvable:$true] %s788
          %794 = dma.vmem_to_hbm [thread:$0]  %s789, 2048, %s787, %s769, 256, 256, 16
        $region48: #{tpu_custom_call.1} parent=31 // pred_fallthru
          _
        // Predicated region
        $region49: #{tpu_custom_call.1} parent=31 // pred_check
          %p795 = pneg %p150
        $region50: #{tpu_custom_call.1} parent=31 // pred_check_branch
          %797 = sbr.rel (%p795) target = $region52
        $region51: #{tpu_custom_call.1} parent=31 // pred_region
          %s798 = smul.u32 8, %s28
          %s800 = ssub.s32 2048, 2048
          %801 = vsyncadd %s774, %s800
          %s802 = smul.addr %s798, 2
          %s803 = smul.addr %s802, 128
          %s804 = scalar_lea.hbm %s4, %s803
          %s805 = sshll.u32 %s777, 4
          %s806 = int_to_ptr.vmem [resolvable:$true] %s805
          %811 = dma.vmem_to_hbm [thread:$0]  %s806, 2048, %s804, %s774, 256, 256, 16
        $region52: #{tpu_custom_call.1} parent=31 // pred_fallthru
          _
      $region32: #{tpu_custom_call.1} parent=5 // pred_fallthru
        _
      %p812 = scmp.le.s32.totalorder 2, %s23
      // Predicated region
      $region53: #{tpu_custom_call.1} parent=5 // pred_check
        %p813 = pneg %p812
      $region54: #{tpu_custom_call.1} parent=5 // pred_check_branch
        %815 = sbr.rel (%p813) target = $region56
      $region55: #{tpu_custom_call.1} parent=5 // pred_region
        %s816 = ssub.s32 %s23, 2
        // Predicated region
        $region57: #{tpu_custom_call.1} parent=55 // pred_check
          %p817 = pneg %p130
        $region58: #{tpu_custom_call.1} parent=55 // pred_check_branch
          %819 = sbr.rel (%p817) target = $region60
        $region59: #{tpu_custom_call.1} parent=55 // pred_region
          %s820 = sand.u32 %s115, 1
          %s821 = scalar_lea.sflag [#allocation4], %s820
          %s822 = sand.u32 %s115, 1
          %s823 = smul.addr %s822, 128
          %s824 = scalar_lea.vmem [#allocation8], %s823
          %825 = dma.done %s821, 2048
        $region60: #{tpu_custom_call.1} parent=55 // pred_fallthru
          _
        // Predicated region
        $region61: #{tpu_custom_call.1} parent=55 // pred_check
          %p826 = pneg %p156
        $region62: #{tpu_custom_call.1} parent=55 // pred_check_branch
          %828 = sbr.rel (%p826) target = $region64
        $region63: #{tpu_custom_call.1} parent=55 // pred_region
          %s829 = sand.u32 %s141, 1
          %s830 = scalar_lea.sflag [#allocation10], %s829
          %s831 = sand.u32 %s141, 1
          %s832 = smul.addr %s831, 128
          %s833 = scalar_lea.vmem [#allocation9], %s832
          %834 = dma.done %s830, 2048
        $region64: #{tpu_custom_call.1} parent=55 // pred_fallthru
          _
      $region56: #{tpu_custom_call.1} parent=5 // pred_fallthru
        _
    $region6: #{tpu_custom_call.1} parent=1 // loop_footer
      %s27 = sadd.s32 1, %s23
    $region7: #{tpu_custom_call.1} parent=1 // loop_footer_branch
      %22 = sbr.rel target = $region3
    $region8: #{tpu_custom_call.1} parent=1 // loop_exit
      _
    %835 = vsyncpa [#allocation3], 1
    %s836 = scalar_lea.sflag [#allocation3], 1
    %837 = vsyncpa %s836, 1
    %838 = vsyncpa [#allocation6], 1
    %s839 = scalar_lea.sflag [#allocation6], 1
    %840 = vsyncpa %s839, 1
    %841 = vsyncpa [#allocation4], 1
    %s842 = scalar_lea.sflag [#allocation4], 1
    %843 = vsyncpa %s842, 1
    %844 = vsyncpa [#allocation10], 1
    %s845 = scalar_lea.sflag [#allocation10], 1
    %846 = vsyncpa %s845, 1

</llo_original>
